<compile_context>
chip_gen: v7x
topology: tpu7x:2x2x1
jax: 0.10.0
libtpu: 0.0.40
codegen_flags: <defaults>
</compile_context>

<pallas_src>
import functools

import jax
import jax.numpy as jnp
from jax.experimental import pallas as pl
from jax.experimental.pallas import tpu as pltpu


def _round_up(x, m):
    return (x + m - 1) // m * m


def _fused_kernel(patches_ref, wmat_ref, bias_ref, gamma_ref, beta_ref, o_ref,
                  *, eps, n_valid_cols, count):
    """One batch sample: conv-transpose matmul + bias + LayerNorm + affine + ReLU.

    patches_ref: (1, CKKp, HWp)  im2col patches of the dilated/padded input
    wmat_ref:    (Cp, CKKp)      flipped / reshaped ConvTranspose2d weight
    bias_ref:    (Cp, 1)         conv bias (zero in padded rows)
    gamma_ref:   (Cp, 1)         per-channel LayerNorm weight
    beta_ref:    (Cp, 1)         per-channel LayerNorm bias
    o_ref:       (1, Cp, HWp)
    """
    p = patches_ref[0].astype(jnp.float32)           # (CKKp, HWp)
    w = wmat_ref[...].astype(jnp.float32)            # (Cp, CKKp)

    # ConvTranspose2d as an MXU matmul (+ bias), accumulated in f32.
    conv = jnp.dot(w, p, preferred_element_type=jnp.float32) + bias_ref[...]

    # Zero lane-padding columns so they do not pollute the statistics.
    if n_valid_cols != conv.shape[-1]:
        col = jax.lax.broadcasted_iota(jnp.int32, conv.shape, 1)
        conv = jnp.where(col < n_valid_cols, conv, 0.0)

    # Single-pass LayerNorm statistics over (C, H, W). Padded rows/cols are
    # exactly zero; `count` only counts real elements.
    s = jnp.sum(conv)
    ss = jnp.sum(conv * conv)
    mean = s / count
    var = jnp.maximum(ss / count - mean * mean, 0.0)
    inv = jax.lax.rsqrt(var + eps)

    # Per-channel affine ((C,1) broadcasts across lanes) + fused ReLU epilogue.
    y = (conv - mean) * inv * gamma_ref[...] + beta_ref[...]
    y = jnp.maximum(y, 0.0)
    o_ref[0] = y.astype(o_ref.dtype)


def _im2col_conv_transpose(x, k, stride, padding, output_padding):
    """Build im2col patches so that ConvTranspose2d == Wmat @ patches + bias."""
    n, cin, h, w = x.shape
    assert k - 1 - padding >= 0, "padding > kernel_size - 1 not supported"
    ho = (h - 1) * stride - 2 * padding + k + output_padding
    wo = (w - 1) * stride - 2 * padding + k + output_padding
    # Zero-dilate the input by the stride.
    hd, wd = (h - 1) * stride + 1, (w - 1) * stride + 1
    xd = jnp.zeros((n, cin, hd, wd), x.dtype).at[:, :, ::stride, ::stride].set(x)
    # Pad so a stride-1 VALID conv with the flipped kernel equals the conv-transpose.
    lo = k - 1 - padding
    hi = k - 1 - padding + output_padding
    xp = jnp.pad(xd, ((0, 0), (0, 0), (lo, hi), (lo, hi)))
    # patches[n, ci*k*k + kh*k + kw, oh*wo + ow] = xp[n, ci, oh+kh, ow+kw]
    cols = [xp[:, :, kh:kh + ho, kw:kw + wo] for kh in range(k) for kw in range(k)]
    patches = jnp.stack(cols, axis=2).reshape(n, cin * k * k, ho * wo)
    return patches, ho, wo


def relu_ins_conv_transpose2d(x, conv_weight, conv_bias, ln_weight, ln_bias, *,
                              stride, padding, output_padding, eps=1e-5):
    """Forward of ReLUINSConvTranspose2d.

    x:           (N, Cin, H, W)
    conv_weight: (Cin, Cout, K, K)   (PyTorch ConvTranspose2d layout)
    conv_bias:   (Cout,)
    ln_weight:   (Cout, 1, 1)
    ln_bias:     (Cout, 1, 1)
    """
    n, cin, h, w = x.shape
    cin_w, cout, k, k2 = conv_weight.shape
    assert cin_w == cin and k == k2

    # TODO(synk): im2col / zero-dilation below is plain-XLA data movement; all
    # compute (matmul, bias, LayerNorm, affine, ReLU) runs inside the Pallas kernel.
    patches, ho, wo = _im2col_conv_transpose(x, k, stride, padding, output_padding)
    ckk = cin * k * k
    hwo = ho * wo

    # Pad to TPU-friendly shapes: lanes (last dim) to 128, sublanes to 8. Padding
    # is all-zero so it contributes nothing to the matmul or the statistics.
    hwp = _round_up(hwo, 128)
    ckkp = _round_up(ckk, 8)
    cp = _round_up(cout, 8)
    patches = jnp.pad(patches, ((0, 0), (0, ckkp - ckk), (0, hwp - hwo)))

    # ConvTranspose weight -> stride-1 conv weight: flip spatially, swap in/out.
    wmat = jnp.transpose(conv_weight[:, :, ::-1, ::-1], (1, 0, 2, 3)).reshape(cout, ckk)
    wmat = jnp.pad(wmat.astype(jnp.float32), ((0, cp - cout), (0, ckkp - ckk)))
    b2 = jnp.pad(conv_bias.reshape(cout, 1).astype(jnp.float32), ((0, cp - cout), (0, 0)))
    g2 = jnp.pad(ln_weight.reshape(cout, 1).astype(jnp.float32), ((0, cp - cout), (0, 0)))
    be2 = jnp.pad(ln_bias.reshape(cout, 1).astype(jnp.float32), ((0, cp - cout), (0, 0)))

    kernel = functools.partial(_fused_kernel, eps=float(eps),
                               n_valid_cols=hwo, count=float(cout * hwo))

    # VMEM budget: double-buffered patches + output blocks, plus resident params.
    block_bytes = 4 * (2 * ckkp * hwp + 2 * cp * hwp)
    resident_bytes = 4 * (cp * ckkp + 3 * cp)
    vmem_limit = int(min(max(2 * (block_bytes + resident_bytes), 16 << 20), 48 << 20))

    out = pl.pallas_call(
        kernel,
        out_shape=jax.ShapeDtypeStruct((n, cp, hwp), x.dtype),
        grid=(n,),
        in_specs=[
            pl.BlockSpec((1, ckkp, hwp), lambda b: (b, 0, 0)),  # one sample / step
            pl.BlockSpec((cp, ckkp), lambda b: (0, 0)),         # conv weight (resident)
            pl.BlockSpec((cp, 1), lambda b: (0, 0)),            # conv bias
            pl.BlockSpec((cp, 1), lambda b: (0, 0)),            # LN gamma
            pl.BlockSpec((cp, 1), lambda b: (0, 0)),            # LN beta
        ],
        out_specs=pl.BlockSpec((1, cp, hwp), lambda b: (b, 0, 0)),
        compiler_params=pltpu.CompilerParams(
            dimension_semantics=("parallel",),   # batch axis -> both TCs on v7x
            vmem_limit_bytes=vmem_limit),
    )(patches, wmat, b2, g2, be2)

    return out[:, :cout, :hwo].reshape(n, cout, ho, wo)


def _reference(x, conv_weight, conv_bias, ln_weight, ln_bias, *, stride, padding,
               output_padding, eps=1e-5):
    """Plain-JAX reference: ConvTranspose2d + F.layer_norm semantics + ReLU."""
    k = conv_weight.shape[2]
    lo = k - 1 - padding
    hi = k - 1 - padding + output_padding
    rhs = jnp.transpose(conv_weight[:, :, ::-1, ::-1], (1, 0, 2, 3))  # (Cout,Cin,K,K)
    y = jax.lax.conv_general_dilated(
        x, rhs, window_strides=(1, 1), padding=((lo, hi), (lo, hi)),
        lhs_dilation=(stride, stride),
        dimension_numbers=("NCHW", "OIHW", "NCHW"),
    ) + conv_bias[None, :, None, None]
    mean = jnp.mean(y, axis=(1, 2, 3), keepdims=True)
    var = jnp.mean(jnp.square(y - mean), axis=(1, 2, 3), keepdims=True)
    yn = (y - mean) * jax.lax.rsqrt(var + eps)
    yn = yn * ln_weight[None] + ln_bias[None]
    return jnp.maximum(yn, 0.0)


if __name__ == "__main__":
    key = jax.random.PRNGKey(0)
    kx, kw, kb = jax.random.split(key, 3)

    # ReLUINSConvTranspose2d(n_in=4, n_out=4, kernel_size=3, stride=2,
    #                        padding=1, output_padding=1) on a (2, 4, 16, 16) input.
    n, cin, hgt, wid = 2, 4, 16, 16
    cout, ksz, stride, padding, output_padding = 4, 3, 2, 1, 1

    x = jax.random.normal(kx, (n, cin, hgt, wid), dtype=jnp.float32)
    # gaussian_weights_init: Conv* weights ~ N(0, 0.02); bias small deterministic.
    conv_weight = 0.02 * jax.random.normal(kw, (cin, cout, ksz, ksz), dtype=jnp.float32)
    conv_bias = 0.1 * jax.random.normal(kb, (cout,), dtype=jnp.float32)
    # LayerNorm affine init per the module: ones / zeros, shape (n_out, 1, 1).
    ln_weight = jnp.ones((cout, 1, 1), dtype=jnp.float32)
    ln_bias = jnp.zeros((cout, 1, 1), dtype=jnp.float32)

    y = relu_ins_conv_transpose2d(
        x, conv_weight, conv_bias, ln_weight, ln_bias,
        stride=stride, padding=padding, output_padding=output_padding)
    y = jax.block_until_ready(y)

    y_ref = _reference(
        x, conv_weight, conv_bias, ln_weight, ln_bias,
        stride=stride, padding=padding, output_padding=output_padding)

    assert y.shape == y_ref.shape == (n, cout, 32, 32)
    assert jnp.max(jnp.abs(y - y_ref)) < 1e-3
    print("KERNEL_OK")
</pallas_src>

<mosaic_0001>
module attributes {stable_mosaic.version = 11 : i64} {
  func.func @_fused_kernel(%arg0: i32, %arg1: memref<1x40x1024xf32, #tpu.memory_space<vmem>>, %arg2: memref<8x40xf32, #tpu.memory_space<vmem>>, %arg3: memref<8x1xf32, #tpu.memory_space<vmem>>, %arg4: memref<8x1xf32, #tpu.memory_space<vmem>>, %arg5: memref<8x1xf32, #tpu.memory_space<vmem>>, %arg6: memref<1x8x1024xf32, #tpu.memory_space<vmem>>) attributes {dimension_semantics = [#tpu.dimension_semantics<parallel>], iteration_bounds = array<i64: 2>, scalar_prefetch = 0 : i64, scratch_operands = 0 : i64, tpu.core_type = #tpu.core_type<tc>, window_params = [{transform_indices = @transform_0, window_bounds = array<i64: 1, 40, 1024>}, {pipeline_mode = #tpu.pipeline_mode<synchronous>, transform_indices = @transform_1, window_bounds = array<i64: 8, 40>}, {pipeline_mode = #tpu.pipeline_mode<synchronous>, transform_indices = @transform_2, window_bounds = array<i64: 8, 1>}, {pipeline_mode = #tpu.pipeline_mode<synchronous>, transform_indices = @transform_3, window_bounds = array<i64: 8, 1>}, {pipeline_mode = #tpu.pipeline_mode<synchronous>, transform_indices = @transform_4, window_bounds = array<i64: 8, 1>}, {transform_indices = @transform_5, window_bounds = array<i64: 1, 8, 1024>}]} {
    %c0 = arith.constant 0 : index
    %c0_0 = arith.constant 0 : index
    %c0_1 = arith.constant 0 : index
    %0 = vector.load %arg1[%c0, %c0_0, %c0_1] : memref<1x40x1024xf32, #tpu.memory_space<vmem>>, vector<1x40x1024xf32>
    %1 = vector.shape_cast %0 : vector<1x40x1024xf32> to vector<40x1024xf32>
    %c0_2 = arith.constant 0 : index
    %c0_3 = arith.constant 0 : index
    %2 = vector.load %arg2[%c0_2, %c0_3] : memref<8x40xf32, #tpu.memory_space<vmem>>, vector<8x40xf32>
    %cst = arith.constant dense<0.000000e+00> : vector<8x1024xf32>
    %3 = tpu.matmul %2, %1, %cst {dimension_numbers = #tpu.dot_dimension_numbers<[1], [0], [0], [1], [0, 0, 1, 1], [], []>} : vector<8x40xf32>, vector<40x1024xf32>, vector<8x1024xf32> -> vector<8x1024xf32>
    %c0_4 = arith.constant 0 : index
    %c0_5 = arith.constant 0 : index
    %4 = vector.load %arg3[%c0_4, %c0_5] : memref<8x1xf32, #tpu.memory_space<vmem>>, vector<8x1xf32>
    %5 = vector.broadcast %4 : vector<8x1xf32> to vector<8x1024xf32>
    %6 = arith.addf %3, %5 : vector<8x1024xf32>
    %7 = vector.shape_cast %6 : vector<8x1024xf32> to vector<1x8x1024xf32>
    %cst_6 = arith.constant dense<0.000000e+00> : vector<1xf32>
    %8 = vector.multi_reduction <add>, %7, %cst_6 [1, 2] : vector<1x8x1024xf32> to vector<1xf32>
    %9 = vector.shape_cast %8 : vector<1xf32> to vector<1x1x1xf32>
    %10 = vector.extract %9[0, 0, 0] : f32 from vector<1x1x1xf32>
    %11 = arith.mulf %6, %6 : vector<8x1024xf32>
    %12 = vector.shape_cast %11 : vector<8x1024xf32> to vector<1x8x1024xf32>
    %cst_7 = arith.constant dense<0.000000e+00> : vector<1xf32>
    %13 = vector.multi_reduction <add>, %12, %cst_7 [1, 2] : vector<1x8x1024xf32> to vector<1xf32>
    %14 = vector.shape_cast %13 : vector<1xf32> to vector<1x1x1xf32>
    %15 = vector.extract %14[0, 0, 0] : f32 from vector<1x1x1xf32>
    %cst_8 = arith.constant 4.096000e+03 : f32
    %16 = arith.divf %10, %cst_8 : f32
    %cst_9 = arith.constant 4.096000e+03 : f32
    %17 = arith.divf %15, %cst_9 : f32
    %18 = arith.mulf %16, %16 : f32
    %19 = arith.subf %17, %18 : f32
    %cst_10 = arith.constant 0.000000e+00 : f32
    %20 = arith.maximumf %19, %cst_10 : f32
    %cst_11 = arith.constant 9.99999974E-6 : f32
    %21 = arith.addf %20, %cst_11 : f32
    %22 = math.rsqrt %21 : f32
    %23 = vector.broadcast %16 : f32 to vector<8x1024xf32>
    %24 = arith.subf %6, %23 : vector<8x1024xf32>
    %25 = vector.broadcast %22 : f32 to vector<8x1024xf32>
    %26 = arith.mulf %24, %25 : vector<8x1024xf32>
    %c0_12 = arith.constant 0 : index
    %c0_13 = arith.constant 0 : index
    %27 = vector.load %arg4[%c0_12, %c0_13] : memref<8x1xf32, #tpu.memory_space<vmem>>, vector<8x1xf32>
    %28 = vector.broadcast %27 : vector<8x1xf32> to vector<8x1024xf32>
    %29 = arith.mulf %26, %28 : vector<8x1024xf32>
    %c0_14 = arith.constant 0 : index
    %c0_15 = arith.constant 0 : index
    %30 = vector.load %arg5[%c0_14, %c0_15] : memref<8x1xf32, #tpu.memory_space<vmem>>, vector<8x1xf32>
    %31 = vector.broadcast %30 : vector<8x1xf32> to vector<8x1024xf32>
    %32 = arith.addf %29, %31 : vector<8x1024xf32>
    %cst_16 = arith.constant 0.000000e+00 : f32
    %33 = vector.broadcast %cst_16 : f32 to vector<8x1024xf32>
    %34 = arith.maximumf %32, %33 : vector<8x1024xf32>
    %c0_17 = arith.constant 0 : index
    %c0_18 = arith.constant 0 : index
    %c0_19 = arith.constant 0 : index
    %35 = vector.load %arg6[%c0_17, %c0_18, %c0_19] : memref<1x8x1024xf32, #tpu.memory_space<vmem>>, vector<1x8x1024xf32>
    %36 = vector.shape_cast %35 : vector<1x8x1024xf32> to vector<8x1024xf32>
    %37 = vector.shape_cast %34 : vector<8x1024xf32> to vector<1x8x1024xf32>
    tpu.vector_store %arg6[%c0_17, %c0_18, %c0_19], %37 {strides = array<i32>} : memref<1x8x1024xf32, #tpu.memory_space<vmem>>, vector<1x8x1024xf32>,
    return
  }
  func.func @transform_0(%arg0: i32) -> (i32, i32, i32) {
    %c0_i32 = arith.constant 0 : i32
    %c0_i32_0 = arith.constant 0 : i32
    %c0_i32_1 = arith.constant 0 : i32
    return %arg0, %c0_i32, %c0_i32_0 : i32, i32, i32
  }
  func.func @transform_1(%arg0: i32) -> (i32, i32) {
    %c0_i32 = arith.constant 0 : i32
    %c0_i32_0 = arith.constant 0 : i32
    %c0_i32_1 = arith.constant 0 : i32
    return %c0_i32, %c0_i32_0 : i32, i32
  }
  func.func @transform_2(%arg0: i32) -> (i32, i32) {
    %c0_i32 = arith.constant 0 : i32
    %c0_i32_0 = arith.constant 0 : i32
    %c0_i32_1 = arith.constant 0 : i32
    return %c0_i32, %c0_i32_0 : i32, i32
  }
  func.func @transform_3(%arg0: i32) -> (i32, i32) {
    %c0_i32 = arith.constant 0 : i32
    %c0_i32_0 = arith.constant 0 : i32
    %c0_i32_1 = arith.constant 0 : i32
    return %c0_i32, %c0_i32_0 : i32, i32
  }
  func.func @transform_4(%arg0: i32) -> (i32, i32) {
    %c0_i32 = arith.constant 0 : i32
    %c0_i32_0 = arith.constant 0 : i32
    %c0_i32_1 = arith.constant 0 : i32
    return %c0_i32, %c0_i32_0 : i32, i32
  }
  func.func @transform_5(%arg0: i32) -> (i32, i32, i32) {
    %c0_i32 = arith.constant 0 : i32
    %c0_i32_0 = arith.constant 0 : i32
    %c0_i32_1 = arith.constant 0 : i32
    return %arg0, %c0_i32, %c0_i32_0 : i32, i32, i32
  }
}

</mosaic_0001>

<llo_original>
// kernel: tpu_custom_call.1
$region0: #{tpu_custom_call.1}
  #allocation0 [shape = 'u32[]', space=smem, size = 0x4, offset = 0x4, fixed_abs, tag = 'smem constant byte address 0x4 - core index']
  #allocation1 [shape = 'u32[144,128]{1,0:T(1,128)}', space=vmem, size = 0x12000, scoped, tag = 'internal scratch']
  %s0 = inlined_call_operand.hbm [shape: f32[2,40,1024], index: 0, kind: input, shape index: {}]
  %s1 = inlined_call_operand.vmem [shape: f32[8,40], index: 1, kind: input, shape index: {}]
  %s2 = inlined_call_operand.vmem [shape: f32[8,1], index: 2, kind: input, shape index: {}]
  %s3 = inlined_call_operand.vmem [shape: f32[8,1], index: 3, kind: input, shape index: {}]
  %s4 = inlined_call_operand.vmem [shape: f32[8,1], index: 4, kind: input, shape index: {}]
  %s5 = inlined_call_operand.hbm [shape: f32[2,8,1024], index: 5, kind: output, shape index: {}]
  %s6 = sld [smem:[#allocation0]]
  $region57: #{tpu_custom_call.1} parent=0
    _
  %s8 = ssub.s32 1, %s6
  %s9 = scalar_select 0, %s8, %s6
  $region1: #{tpu_custom_call.1} parent=0
    #allocation2 [shape = 'u8[327680]{0}', space=vmem, size = 0x50000, scoped, tag = 'input window, operand 0']
    #allocation3 [shape = 's32[2]{0}', space=sflag, size = 0x8, scoped, tag = 'scoped memory for tpu_custom_call.1']
    #allocation4 [shape = 's32[2]{0}', space=sflag, size = 0x8, scoped, tag = 'scoped memory for tpu_custom_call.1']
    #allocation5 [shape = 'u8[65536]{0}', space=vmem, size = 0x10000, scoped, tag = 'output window, operand 0']
    %10 = vsyncpa [#allocation3], 0
    %s11 = scalar_lea.sflag [#allocation3], 1
    %12 = vsyncpa %s11, 0
    %13 = vsyncpa [#allocation4], 0
    %s14 = scalar_lea.sflag [#allocation4], 1
    %15 = vsyncpa %s14, 0
    loop: start=0, step=1, limit=4
    $region2: #{tpu_custom_call.1} parent=1 // loop_pre_header
      _
    $region3: #{tpu_custom_call.1} parent=1 // loop_header
      %s17 = sphi 0, %s21
      %p18 = scmp.ge.s32.totalorder %s17, 4
      %s27 = sphi 0, %s29
      %s30 = sphi 0, %s27
      %s31 = sphi 0, %s30
      %s47 = sphi 0, %s31
      %s51 = sphi 0, %s51
      %s53 = sphi 0, %s51
      %s54 = sphi 0, %s53
      %s68 = sphi 0, %s54
      %s72 = sphi 0, %s72
      %s74 = sphi 0, %s72
      %s75 = sphi 0, %s74
      %s89 = sphi 0, %s75
      %s93 = sphi 0, %s93
      %s95 = sphi 0, %s93
      %s96 = sphi 0, %s95
      %s110 = sphi 0, %s96
      %s114 = sphi 0, %s114
      %s116 = sphi 0, %s114
      %s117 = sphi 0, %s116
      %s131 = sphi 0, %s117
      %s137 = sphi 0, %s139
      %s140 = sphi 0, %s137
      %s141 = sphi 0, %s140
      %s157 = sphi 0, %s141
    $region4: #{tpu_custom_call.1} parent=1 // loop_header_branch
      %20 = sbr.rel (%p18) target = $region8
    $region5: #{tpu_custom_call.1} parent=1 // loop_body
      %s22 = ssub.s32 %s17, 1
      %s23 = ssub.s32 %s17, 2
      %s24 = sadd.s32 %s17, 1
      %s25 = ssub.s32 %s17, %s24
      %p26 = scmp.eq.s32.totalorder %s25, 0
      %s28 = sadd.s32 %s27, 1
      %s29 = scalar_select %p26, %s27, %s28
      %p32 = pneg %p26
      %p33 = scmp.eq.s32.totalorder %s17, 1
      %p34 = por %p32, %p33
      %p35 = scmp.ne.s32.totalorder %s27, %s30
      %p36 = scmp.eq.s32.totalorder %s17, 0
      %p37 = por %p35, %p36
      %p38 = scmp.ne.s32.totalorder %s27, %s30
      %p39 = scmp.eq.s32.totalorder %s22, 1
      %p40 = por %p38, %p39
      %p41 = scmp.ne.s32.totalorder %s30, %s31
      %p42 = scmp.eq.s32.totalorder %s22, 0
      %p43 = por %p41, %p42
      %p44 = scmp.ne.s32.totalorder %s30, %s31
      %p45 = scmp.eq.s32.totalorder %s23, 1
      %p46 = por %p44, %p45
      %p48 = scmp.ne.s32.totalorder %s31, %s47
      %p49 = scmp.eq.s32.totalorder %s23, 0
      %p50 = por %p48, %p49
      %s52 = sadd.s32 %s51, 1
      %p55 = scmp.eq.s32.totalorder %s17, 1
      %p56 = scmp.ne.s32.totalorder %s51, %s53
      %p57 = scmp.eq.s32.totalorder %s17, 0
      %p58 = por %p56, %p57
      %p59 = scmp.ne.s32.totalorder %s51, %s53
      %p60 = scmp.eq.s32.totalorder %s22, 1
      %p61 = por %p59, %p60
      %p62 = scmp.ne.s32.totalorder %s53, %s54
      %p63 = scmp.eq.s32.totalorder %s22, 0
      %p64 = por %p62, %p63
      %p65 = scmp.ne.s32.totalorder %s53, %s54
      %p66 = scmp.eq.s32.totalorder %s23, 1
      %p67 = por %p65, %p66
      %p69 = scmp.ne.s32.totalorder %s54, %s68
      %p70 = scmp.eq.s32.totalorder %s23, 0
      %p71 = por %p69, %p70
      %s73 = sadd.s32 %s72, 1
      %p76 = scmp.eq.s32.totalorder %s17, 1
      %p77 = scmp.ne.s32.totalorder %s72, %s74
      %p78 = scmp.eq.s32.totalorder %s17, 0
      %p79 = por %p77, %p78
      %p80 = scmp.ne.s32.totalorder %s72, %s74
      %p81 = scmp.eq.s32.totalorder %s22, 1
      %p82 = por %p80, %p81
      %p83 = scmp.ne.s32.totalorder %s74, %s75
      %p84 = scmp.eq.s32.totalorder %s22, 0
      %p85 = por %p83, %p84
      %p86 = scmp.ne.s32.totalorder %s74, %s75
      %p87 = scmp.eq.s32.totalorder %s23, 1
      %p88 = por %p86, %p87
      %p90 = scmp.ne.s32.totalorder %s75, %s89
      %p91 = scmp.eq.s32.totalorder %s23, 0
      %p92 = por %p90, %p91
      %s94 = sadd.s32 %s93, 1
      %p97 = scmp.eq.s32.totalorder %s17, 1
      %p98 = scmp.ne.s32.totalorder %s93, %s95
      %p99 = scmp.eq.s32.totalorder %s17, 0
      %p100 = por %p98, %p99
      %p101 = scmp.ne.s32.totalorder %s93, %s95
      %p102 = scmp.eq.s32.totalorder %s22, 1
      %p103 = por %p101, %p102
      %p104 = scmp.ne.s32.totalorder %s95, %s96
      %p105 = scmp.eq.s32.totalorder %s22, 0
      %p106 = por %p104, %p105
      %p107 = scmp.ne.s32.totalorder %s95, %s96
      %p108 = scmp.eq.s32.totalorder %s23, 1
      %p109 = por %p107, %p108
      %p111 = scmp.ne.s32.totalorder %s96, %s110
      %p112 = scmp.eq.s32.totalorder %s23, 0
      %p113 = por %p111, %p112
      %s115 = sadd.s32 %s114, 1
      %p118 = scmp.eq.s32.totalorder %s17, 1
      %p119 = scmp.ne.s32.totalorder %s114, %s116
      %p120 = scmp.eq.s32.totalorder %s17, 0
      %p121 = por %p119, %p120
      %p122 = scmp.ne.s32.totalorder %s114, %s116
      %p123 = scmp.eq.s32.totalorder %s22, 1
      %p124 = por %p122, %p123
      %p125 = scmp.ne.s32.totalorder %s116, %s117
      %p126 = scmp.eq.s32.totalorder %s22, 0
      %p127 = por %p125, %p126
      %p128 = scmp.ne.s32.totalorder %s116, %s117
      %p129 = scmp.eq.s32.totalorder %s23, 1
      %p130 = por %p128, %p129
      %p132 = scmp.ne.s32.totalorder %s117, %s131
      %p133 = scmp.eq.s32.totalorder %s23, 0
      %p134 = por %p132, %p133
      %s135 = ssub.s32 %s17, %s24
      %p136 = scmp.eq.s32.totalorder %s135, 0
      %s138 = sadd.s32 %s137, 1
      %s139 = scalar_select %p136, %s137, %s138
      %p142 = pneg %p136
      %p143 = scmp.eq.s32.totalorder %s17, 1
      %p144 = por %p142, %p143
      %p145 = scmp.ne.s32.totalorder %s137, %s140
      %p146 = scmp.eq.s32.totalorder %s17, 0
      %p147 = por %p145, %p146
      %p148 = scmp.ne.s32.totalorder %s137, %s140
      %p149 = scmp.eq.s32.totalorder %s22, 1
      %p150 = por %p148, %p149
      %p151 = scmp.ne.s32.totalorder %s140, %s141
      %p152 = scmp.eq.s32.totalorder %s22, 0
      %p153 = por %p151, %p152
      %p154 = scmp.ne.s32.totalorder %s140, %s141
      %p155 = scmp.eq.s32.totalorder %s23, 1
      %p156 = por %p154, %p155
      %p158 = scmp.ne.s32.totalorder %s141, %s157
      %p159 = scmp.eq.s32.totalorder %s23, 0
      %p160 = por %p158, %p159
      %p161 = scmp.le.s32.totalorder 1, %s17
      %p162 = scmp.lt.s32.totalorder %s17, 3
      %p163 = pnand %p161, %p162
      %p164 = pneg %p163
      // Predicated region
      $region9: #{tpu_custom_call.1} parent=5 // pred_check
        _
      $region10: #{tpu_custom_call.1} parent=5 // pred_check_branch
        %166 = sbr.rel (%p163) target = $region12
      $region11: #{tpu_custom_call.1} parent=5 // pred_region
        %s167 = ssub.s32 %s17, 1
        // Predicated region
        $region13: #{tpu_custom_call.1} parent=11 // pred_check
          %p168 = pneg %p64
        $region14: #{tpu_custom_call.1} parent=11 // pred_check_branch
          %170 = sbr.rel (%p168) target = $region16
        $region15: #{tpu_custom_call.1} parent=11 // pred_region
          _
        $region16: #{tpu_custom_call.1} parent=11 // pred_fallthru
          _
        // Predicated region
        $region17: #{tpu_custom_call.1} parent=11 // pred_check
          %p171 = pneg %p85
        $region18: #{tpu_custom_call.1} parent=11 // pred_check_branch
          %173 = sbr.rel (%p171) target = $region20
        $region19: #{tpu_custom_call.1} parent=11 // pred_region
          _
        $region20: #{tpu_custom_call.1} parent=11 // pred_fallthru
          _
        // Predicated region
        $region21: #{tpu_custom_call.1} parent=11 // pred_check
          %p174 = pneg %p106
        $region22: #{tpu_custom_call.1} parent=11 // pred_check_branch
          %176 = sbr.rel (%p174) target = $region24
        $region23: #{tpu_custom_call.1} parent=11 // pred_region
          _
        $region24: #{tpu_custom_call.1} parent=11 // pred_fallthru
          _
        // Predicated region
        $region25: #{tpu_custom_call.1} parent=11 // pred_check
          %p177 = pneg %p127
        $region26: #{tpu_custom_call.1} parent=11 // pred_check_branch
          %179 = sbr.rel (%p177) target = $region28
        $region27: #{tpu_custom_call.1} parent=11 // pred_region
          _
        $region28: #{tpu_custom_call.1} parent=11 // pred_fallthru
          _
      $region12: #{tpu_custom_call.1} parent=5 // pred_fallthru
        _
      %p180 = scmp.lt.s32.totalorder %s17, 2
      // Predicated region
      $region29: #{tpu_custom_call.1} parent=5 // pred_check
        %p181 = pneg %p180
      $region30: #{tpu_custom_call.1} parent=5 // pred_check_branch
        %183 = sbr.rel (%p181) target = $region32
      $region31: #{tpu_custom_call.1} parent=5 // pred_region
        // Predicated region
        $region33: #{tpu_custom_call.1} parent=31 // pred_check
          %p184 = pneg %p37
        $region34: #{tpu_custom_call.1} parent=31 // pred_check_branch
          %186 = sbr.rel (%p184) target = $region36
        $region35: #{tpu_custom_call.1} parent=31 // pred_region
          %s187 = sand.u32 %s27, 1
          %s188 = scalar_lea.sflag [#allocation3], %s187
          %s189 = sand.u32 %s27, 1
          %s190 = smul.addr %s189, 320
          %s191 = scalar_lea.vmem [#allocation2], %s190
          %s193 = ssub.s32 5120, 5120
          %194 = vsyncadd %s188, %s193
          %s195 = smul.addr %s17, 40
          %s196 = smul.addr %s195, 128
          %s197 = scalar_lea.hbm %s0, %s196
          %s198 = sshll.u32 %s191, 4
          %s199 = int_to_ptr.vmem [resolvable:$true] %s198
          %204 = dma.hbm_to_vmem [thread:$0]  %s197, 5120, %s199, %s188, 1024, 1024, 64
        $region36: #{tpu_custom_call.1} parent=31 // pred_fallthru
          _
      $region32: #{tpu_custom_call.1} parent=5 // pred_fallthru
        _
      %p205 = scmp.le.s32.totalorder 1, %s17
      %p206 = scmp.lt.s32.totalorder %s17, 3
      %p207 = pnand %p205, %p206
      %p208 = pneg %p207
      // Predicated region
      $region37: #{tpu_custom_call.1} parent=5 // pred_check
        _
      $region38: #{tpu_custom_call.1} parent=5 // pred_check_branch
        %210 = sbr.rel (%p207) target = $region40
      $region39: #{tpu_custom_call.1} parent=5 // pred_region
        %s211 = ssub.s32 %s17, 1
        %s212 = sand.u32 %s30, 1
        %s213 = scalar_lea.sflag [#allocation3], %s212
        %s214 = sand.u32 %s30, 1
        %s215 = smul.addr %s214, 320
        %s216 = scalar_lea.vmem [#allocation2], %s215
        // Predicated region
        $region41: #{tpu_custom_call.1} parent=39 // pred_check
          %p217 = pneg %p43
        $region42: #{tpu_custom_call.1} parent=39 // pred_check_branch
          %219 = sbr.rel (%p217) target = $region44
        $region43: #{tpu_custom_call.1} parent=39 // pred_region
          %220 = dma.done %s213, 5120
        $region44: #{tpu_custom_call.1} parent=39 // pred_fallthru
          _
        %s221 = sand.u32 %s30, 1
        %s222 = scalar_lea.sflag [#allocation3], %s221
        %s223 = sand.u32 %s30, 1
        %s224 = smul.addr %s223, 320
        %s225 = scalar_lea.vmem [#allocation2], %s224
        %p226 = pneg %p43
        %p227 = pneg %p40
        %p228 = pneg %p64
        %p229 = pneg %p61
        %p230 = pneg %p85
        %p231 = pneg %p82
        %p232 = pneg %p106
        %p233 = pneg %p103
        %p234 = pneg %p127
        %p235 = pneg %p124
        %p236 = pneg %p153
        %p237 = pneg %p150
        %s238 = sand.u32 %s140, 1
        %s239 = scalar_lea.sflag [#allocation4], %s238
        %s240 = sand.u32 %s140, 1
        %s241 = smul.addr %s240, 64
        %s242 = scalar_lea.vmem [#allocation5], %s241
        %v243 = vld [vmem:[%s216] sm:$0xff]
        %v244 = vld [vmem:[%s216 + $0x8] sm:$0xff]
        %v245 = vld [vmem:[%s216 + $0x10] sm:$0xff]
        %v246 = vld [vmem:[%s216 + $0x18] sm:$0xff]
        %v247 = vld [vmem:[%s216 + $0x20] sm:$0xff]
        %v248 = vld [vmem:[%s216 + $0x28] sm:$0xff]
        %v249 = vld [vmem:[%s216 + $0x30] sm:$0xff]
        %v250 = vld [vmem:[%s216 + $0x38] sm:$0xff]
        %v251 = vld [vmem:[%s216 + $0x40] sm:$0xff]
        %v252 = vld [vmem:[%s216 + $0x48] sm:$0xff]
        %v253 = vld [vmem:[%s216 + $0x50] sm:$0xff]
        %v254 = vld [vmem:[%s216 + $0x58] sm:$0xff]
        %v255 = vld [vmem:[%s216 + $0x60] sm:$0xff]
        %v256 = vld [vmem:[%s216 + $0x68] sm:$0xff]
        %v257 = vld [vmem:[%s216 + $0x70] sm:$0xff]
        %v258 = vld [vmem:[%s216 + $0x78] sm:$0xff]
        %v259 = vld [vmem:[%s216 + $0x80] sm:$0xff]
        %v260 = vld [vmem:[%s216 + $0x88] sm:$0xff]
        %v261 = vld [vmem:[%s216 + $0x90] sm:$0xff]
        %v262 = vld [vmem:[%s216 + $0x98] sm:$0xff]
        %v263 = vld [vmem:[%s216 + $0xa0] sm:$0xff]
        %v264 = vld [vmem:[%s216 + $0xa8] sm:$0xff]
        %v265 = vld [vmem:[%s216 + $0xb0] sm:$0xff]
        %v266 = vld [vmem:[%s216 + $0xb8] sm:$0xff]
        %v267 = vld [vmem:[%s216 + $0xc0] sm:$0xff]
        %v268 = vld [vmem:[%s216 + $0xc8] sm:$0xff]
        %v269 = vld [vmem:[%s216 + $0xd0] sm:$0xff]
        %v270 = vld [vmem:[%s216 + $0xd8] sm:$0xff]
        %v271 = vld [vmem:[%s216 + $0xe0] sm:$0xff]
        %v272 = vld [vmem:[%s216 + $0xe8] sm:$0xff]
        %v273 = vld [vmem:[%s216 + $0xf0] sm:$0xff]
        %v274 = vld [vmem:[%s216 + $0xf8] sm:$0xff]
        %v275 = vld [vmem:[%s216 + $0x100] sm:$0xff]
        %v276 = vld [vmem:[%s216 + $0x108] sm:$0xff]
        %v277 = vld [vmem:[%s216 + $0x110] sm:$0xff]
        %v278 = vld [vmem:[%s216 + $0x118] sm:$0xff]
        %v279 = vld [vmem:[%s216 + $0x120] sm:$0xff]
        %v280 = vld [vmem:[%s216 + $0x128] sm:$0xff]
        %v281 = vld [vmem:[%s216 + $0x130] sm:$0xff]
        %v282 = vld [vmem:[%s216 + $0x138] sm:$0xff]
        %v283 = vld [vmem:[%s1] sm:$0xff]
        %v284 = vld [vmem:[%s2] sm:$0xff]
        %286 = vset.pattern.permute.xlu0 0
        %287 = vperm.xlu0 %286, %v284
        %v288 = vpop.permute.xlu0 %287
        %vm290 = vcmask 326656
        %v292 = vsel %vm290, %v283, 0
        %294 = vmatprep.subr.mxu0 %v244
        %295 = vmatpush1.msra.mxu0 %v243
        %296 = vmatprep.subr.mxu0 %v252
        %297 = vmatpush1.msra.mxu0 %v251
        %298 = vmatprep.subr.mxu0 %v260
        %299 = vmatpush1.msra.mxu0 %v259
        %300 = vmatprep.subr.mxu0 %v268
        %301 = vmatpush1.msra.mxu0 %v267
        %302 = vmatprep.subr.mxu0 %v276
        %303 = vmatpush1.msra.mxu0 %v275
        %304 = vmatprep.subr.mxu0 0.0
        %305 = vmatpush1.msra.mxu0 0.0
        %306 = vmatprep.subr.mxu0 0.0
        %307 = vmatpush1.msra.mxu0 0.0
        %308 = vmatprep.subr.mxu0 0.0
        %309 = vmatpush1.msra.mxu0 0.0
        %310 = vmatprep.subr.mxu0 0.0
        %311 = vmatpush1.msra.mxu0 0.0
        %312 = vmatprep.subr.mxu0 0.0
        %313 = vmatpush1.msra.mxu0 0.0
        %314 = vmatprep.subr.mxu0 0.0
        %315 = vmatpush1.msra.mxu0 0.0
        %316 = vmatprep.subr.mxu0 0.0
        %317 = vmatpush1.msra.mxu0 0.0
        %318 = vmatprep.subr.mxu0 0.0
        %319 = vmatpush1.msra.mxu0 0.0
        %320 = vmatprep.subr.mxu0 0.0
        %321 = vmatpush1.msra.mxu0 0.0
        %322 = vmatprep.subr.mxu0 0.0
        %323 = vmatpush1.msra.mxu0 0.0
        %324 = vmatprep.subr.mxu0 0.0
        %325 = vmatpush1.msra.mxu0 0.0
        %326 = vmatprep.subr.mxu0 0.0
        %327 = vmatpush1.msra.mxu0 0.0
        %328 = vmatprep.subr.mxu0 0.0
        %329 = vmatpush1.msra.mxu0 0.0
        %330 = vmatprep.subr.mxu0 0.0
        %331 = vmatpush1.msra.mxu0 0.0
        %332 = vmatprep.subr.mxu0 0.0
        %333 = vmatpush1.msra.mxu0 0.0
        %334 = vmatprep.subr.mxu0 0.0
        %335 = vmatpush1.msra.mxu0 0.0
        %336 = vmatprep.subr.mxu0 0.0
        %337 = vmatpush1.msra.mxu0 0.0
        %338 = vmatprep.subr.mxu0 0.0
        %339 = vmatpush1.msra.mxu0 0.0
        %340 = vmatprep.subr.mxu0 0.0
        %341 = vmatpush1.msra.mxu0 0.0
        %342 = vmatprep.subr.mxu0 0.0
        %343 = vmatpush1.msra.mxu0 0.0
        %344 = vmatprep.subr.mxu0 0.0
        %345 = vmatpush1.msra.mxu0 0.0
        %346 = vmatprep.subr.mxu0 0.0
        %347 = vmatpush1.msra.mxu0 0.0
        %348 = vmatprep.subr.mxu0 0.0
        %349 = vmatpush1.msra.mxu0 0.0
        %350 = vmatprep.subr.mxu0 0.0
        %351 = vmatpush1.msra.mxu0 0.0
        %352 = vmatprep.subr.mxu0 0.0
        %353 = vmatpush1.msra.mxu0 0.0
        %354 = vmatprep.subr.mxu0 0.0
        %355 = vmatpush1.msra.mxu0 0.0
        %356 = vmatprep.subr.mxu0 0.0
        %357 = vmatpush1.msra.mxu0 0.0
        %358 = vmatprep.mubr.f32.mxu0 0.0
        %359 = vmatmul.mubr.f32.gmra.mrb[0].mxu0 %v292
        %v360 = vpop.f32.mrb[0].mxu0
        %v361 = vadd.f32 %v288, %v360
        %v362 = vpop.f32.mrb[0].mxu0
        %v363 = vadd.f32 %v288, %v362
        %364 = vdwg.mxu0
        %365 = vmatprep.subr.mxu0 %v246
        %366 = vmatpush1.msra.mxu0 %v245
        %367 = vmatprep.subr.mxu0 %v254
        %368 = vmatpush1.msra.mxu0 %v253
        %369 = vmatprep.subr.mxu0 %v262
        %370 = vmatpush1.msra.mxu0 %v261
        %371 = vmatprep.subr.mxu0 %v270
        %372 = vmatpush1.msra.mxu0 %v269
        %373 = vmatprep.subr.mxu0 %v278
        %374 = vmatpush1.msra.mxu0 %v277
        %375 = vmatprep.subr.mxu0 0.0
        %376 = vmatpush1.msra.mxu0 0.0
        %377 = vmatprep.subr.mxu0 0.0
        %378 = vmatpush1.msra.mxu0 0.0
        %379 = vmatprep.subr.mxu0 0.0
        %380 = vmatpush1.msra.mxu0 0.0
        %381 = vmatprep.subr.mxu0 0.0
        %382 = vmatpush1.msra.mxu0 0.0
        %383 = vmatprep.subr.mxu0 0.0
        %384 = vmatpush1.msra.mxu0 0.0
        %385 = vmatprep.subr.mxu0 0.0
        %386 = vmatpush1.msra.mxu0 0.0
        %387 = vmatprep.subr.mxu0 0.0
        %388 = vmatpush1.msra.mxu0 0.0
        %389 = vmatprep.subr.mxu0 0.0
        %390 = vmatpush1.msra.mxu0 0.0
        %391 = vmatprep.subr.mxu0 0.0
        %392 = vmatpush1.msra.mxu0 0.0
        %393 = vmatprep.subr.mxu0 0.0
        %394 = vmatpush1.msra.mxu0 0.0
        %395 = vmatprep.subr.mxu0 0.0
        %396 = vmatpush1.msra.mxu0 0.0
        %397 = vmatprep.subr.mxu0 0.0
        %398 = vmatpush1.msra.mxu0 0.0
        %399 = vmatprep.subr.mxu0 0.0
        %400 = vmatpush1.msra.mxu0 0.0
        %401 = vmatprep.subr.mxu0 0.0
        %402 = vmatpush1.msra.mxu0 0.0
        %403 = vmatprep.subr.mxu0 0.0
        %404 = vmatpush1.msra.mxu0 0.0
        %405 = vmatprep.subr.mxu0 0.0
        %406 = vmatpush1.msra.mxu0 0.0
        %407 = vmatprep.subr.mxu0 0.0
        %408 = vmatpush1.msra.mxu0 0.0
        %409 = vmatprep.subr.mxu0 0.0
        %410 = vmatpush1.msra.mxu0 0.0
        %411 = vmatprep.subr.mxu0 0.0
        %412 = vmatpush1.msra.mxu0 0.0
        %413 = vmatprep.subr.mxu0 0.0
        %414 = vmatpush1.msra.mxu0 0.0
        %415 = vmatprep.subr.mxu0 0.0
        %416 = vmatpush1.msra.mxu0 0.0
        %417 = vmatprep.subr.mxu0 0.0
        %418 = vmatpush1.msra.mxu0 0.0
        %419 = vmatprep.subr.mxu0 0.0
        %420 = vmatpush1.msra.mxu0 0.0
        %421 = vmatprep.subr.mxu0 0.0
        %422 = vmatpush1.msra.mxu0 0.0
        %423 = vmatprep.subr.mxu0 0.0
        %424 = vmatpush1.msra.mxu0 0.0
        %425 = vmatprep.subr.mxu0 0.0
        %426 = vmatpush1.msra.mxu0 0.0
        %427 = vmatprep.subr.mxu0 0.0
        %428 = vmatpush1.msra.mxu0 0.0
        %429 = vmatprep.mubr.f32.mxu0 0.0
        %430 = vmatmul.mubr.f32.gmra.mrb[0].mxu0 %v292
        %v431 = vpop.f32.mrb[0].mxu0
        %v432 = vadd.f32 %v288, %v431
        %v433 = vpop.f32.mrb[0].mxu0
        %v434 = vadd.f32 %v288, %v433
        %435 = vdwg.mxu0
        %436 = vmatprep.subr.mxu0 %v248
        %437 = vmatpush1.msra.mxu0 %v247
        %438 = vmatprep.subr.mxu0 %v256
        %439 = vmatpush1.msra.mxu0 %v255
        %440 = vmatprep.subr.mxu0 %v264
        %441 = vmatpush1.msra.mxu0 %v263
        %442 = vmatprep.subr.mxu0 %v272
        %443 = vmatpush1.msra.mxu0 %v271
        %444 = vmatprep.subr.mxu0 %v280
        %445 = vmatpush1.msra.mxu0 %v279
        %446 = vmatprep.subr.mxu0 0.0
        %447 = vmatpush1.msra.mxu0 0.0
        %448 = vmatprep.subr.mxu0 0.0
        %449 = vmatpush1.msra.mxu0 0.0
        %450 = vmatprep.subr.mxu0 0.0
        %451 = vmatpush1.msra.mxu0 0.0
        %452 = vmatprep.subr.mxu0 0.0
        %453 = vmatpush1.msra.mxu0 0.0
        %454 = vmatprep.subr.mxu0 0.0
        %455 = vmatpush1.msra.mxu0 0.0
        %456 = vmatprep.subr.mxu0 0.0
        %457 = vmatpush1.msra.mxu0 0.0
        %458 = vmatprep.subr.mxu0 0.0
        %459 = vmatpush1.msra.mxu0 0.0
        %460 = vmatprep.subr.mxu0 0.0
        %461 = vmatpush1.msra.mxu0 0.0
        %462 = vmatprep.subr.mxu0 0.0
        %463 = vmatpush1.msra.mxu0 0.0
        %464 = vmatprep.subr.mxu0 0.0
        %465 = vmatpush1.msra.mxu0 0.0
        %466 = vmatprep.subr.mxu0 0.0
        %467 = vmatpush1.msra.mxu0 0.0
        %468 = vmatprep.subr.mxu0 0.0
        %469 = vmatpush1.msra.mxu0 0.0
        %470 = vmatprep.subr.mxu0 0.0
        %471 = vmatpush1.msra.mxu0 0.0
        %472 = vmatprep.subr.mxu0 0.0
        %473 = vmatpush1.msra.mxu0 0.0
        %474 = vmatprep.subr.mxu0 0.0
        %475 = vmatpush1.msra.mxu0 0.0
        %476 = vmatprep.subr.mxu0 0.0
        %477 = vmatpush1.msra.mxu0 0.0
        %478 = vmatprep.subr.mxu0 0.0
        %479 = vmatpush1.msra.mxu0 0.0
        %480 = vmatprep.subr.mxu0 0.0
        %481 = vmatpush1.msra.mxu0 0.0
        %482 = vmatprep.subr.mxu0 0.0
        %483 = vmatpush1.msra.mxu0 0.0
        %484 = vmatprep.subr.mxu0 0.0
        %485 = vmatpush1.msra.mxu0 0.0
        %486 = vmatprep.subr.mxu0 0.0
        %487 = vmatpush1.msra.mxu0 0.0
        %488 = vmatprep.subr.mxu0 0.0
        %489 = vmatpush1.msra.mxu0 0.0
        %490 = vmatprep.subr.mxu0 0.0
        %491 = vmatpush1.msra.mxu0 0.0
        %492 = vmatprep.subr.mxu0 0.0
        %493 = vmatpush1.msra.mxu0 0.0
        %494 = vmatprep.subr.mxu0 0.0
        %495 = vmatpush1.msra.mxu0 0.0
        %496 = vmatprep.subr.mxu0 0.0
        %497 = vmatpush1.msra.mxu0 0.0
        %498 = vmatprep.subr.mxu0 0.0
        %499 = vmatpush1.msra.mxu0 0.0
        %500 = vmatprep.mubr.f32.mxu0 0.0
        %501 = vmatmul.mubr.f32.gmra.mrb[0].mxu0 %v292
        %v502 = vpop.f32.mrb[0].mxu0
        %v503 = vadd.f32 %v288, %v502
        %v504 = vpop.f32.mrb[0].mxu0
        %v505 = vadd.f32 %v288, %v504
        %506 = vdwg.mxu0
        %507 = vmatprep.subr.mxu0 %v250
        %508 = vmatpush1.msra.mxu0 %v249
        %509 = vmatprep.subr.mxu0 %v258
        %510 = vmatpush1.msra.mxu0 %v257
        %511 = vmatprep.subr.mxu0 %v266
        %512 = vmatpush1.msra.mxu0 %v265
        %513 = vmatprep.subr.mxu0 %v274
        %514 = vmatpush1.msra.mxu0 %v273
        %515 = vmatprep.subr.mxu0 %v282
        %516 = vmatpush1.msra.mxu0 %v281
        %517 = vmatprep.subr.mxu0 0.0
        %518 = vmatpush1.msra.mxu0 0.0
        %519 = vmatprep.subr.mxu0 0.0
        %520 = vmatpush1.msra.mxu0 0.0
        %521 = vmatprep.subr.mxu0 0.0
        %522 = vmatpush1.msra.mxu0 0.0
        %523 = vmatprep.subr.mxu0 0.0
        %524 = vmatpush1.msra.mxu0 0.0
        %525 = vmatprep.subr.mxu0 0.0
        %526 = vmatpush1.msra.mxu0 0.0
        %527 = vmatprep.subr.mxu0 0.0
        %528 = vmatpush1.msra.mxu0 0.0
        %529 = vmatprep.subr.mxu0 0.0
        %530 = vmatpush1.msra.mxu0 0.0
        %531 = vmatprep.subr.mxu0 0.0
        %532 = vmatpush1.msra.mxu0 0.0
        %533 = vmatprep.subr.mxu0 0.0
        %534 = vmatpush1.msra.mxu0 0.0
        %535 = vmatprep.subr.mxu0 0.0
        %536 = vmatpush1.msra.mxu0 0.0
        %537 = vmatprep.subr.mxu0 0.0
        %538 = vmatpush1.msra.mxu0 0.0
        %539 = vmatprep.subr.mxu0 0.0
        %540 = vmatpush1.msra.mxu0 0.0
        %541 = vmatprep.subr.mxu0 0.0
        %542 = vmatpush1.msra.mxu0 0.0
        %543 = vmatprep.subr.mxu0 0.0
        %544 = vmatpush1.msra.mxu0 0.0
        %545 = vmatprep.subr.mxu0 0.0
        %546 = vmatpush1.msra.mxu0 0.0
        %547 = vmatprep.subr.mxu0 0.0
        %548 = vmatpush1.msra.mxu0 0.0
        %549 = vmatprep.subr.mxu0 0.0
        %550 = vmatpush1.msra.mxu0 0.0
        %551 = vmatprep.subr.mxu0 0.0
        %552 = vmatpush1.msra.mxu0 0.0
        %553 = vmatprep.subr.mxu0 0.0
        %554 = vmatpush1.msra.mxu0 0.0
        %555 = vmatprep.subr.mxu0 0.0
        %556 = vmatpush1.msra.mxu0 0.0
        %557 = vmatprep.subr.mxu0 0.0
        %558 = vmatpush1.msra.mxu0 0.0
        %559 = vmatprep.subr.mxu0 0.0
        %560 = vmatpush1.msra.mxu0 0.0
        %561 = vmatprep.subr.mxu0 0.0
        %562 = vmatpush1.msra.mxu0 0.0
        %563 = vmatprep.subr.mxu0 0.0
        %564 = vmatpush1.msra.mxu0 0.0
        %565 = vmatprep.subr.mxu0 0.0
        %566 = vmatpush1.msra.mxu0 0.0
        %567 = vmatprep.subr.mxu0 0.0
        %568 = vmatpush1.msra.mxu0 0.0
        %569 = vmatprep.subr.mxu0 0.0
        %570 = vmatpush1.msra.mxu0 0.0
        %571 = vmatprep.mubr.f32.mxu0 0.0
        %572 = vmatmul.mubr.f32.gmra.mrb[0].mxu0 %v292
        %v573 = vpop.f32.mrb[0].mxu0
        %v574 = vadd.f32 %v288, %v573
        %v575 = vpop.f32.mrb[0].mxu0
        %v576 = vadd.f32 %v288, %v575
        %577 = vdwg.mxu0
        %v578 = vadd.f32 %v361, %v363
        %v579 = vadd.f32 %v578, %v432
        %v580 = vadd.f32 %v579, %v434
        %v581 = vadd.f32 %v580, %v503
        %v582 = vadd.f32 %v581, %v505
        %v583 = vadd.f32 %v582, %v574
        %v584 = vadd.f32 %v583, %v576
        %585 = vadd.xlane.f32.xlu0 %v584
        %v586 = vpop.xlane.xlu0 %585
        %v587 = vrot.slane %v586, 4
        %v588 = vadd.f32 %v586, %v587
        %v589 = vrot.slane %v588, 2
        %v590 = vadd.f32 %v588, %v589
        %v591 = vrot.slane %v590, 1
        %v592 = vadd.f32 %v590, %v591
        %s593 = vtos %v592
        %v594 = vmul.f32 %v361, %v361
        %v595 = vmul.f32 %v363, %v363
        %v596 = vmul.f32 %v432, %v432
        %v597 = vmul.f32 %v434, %v434
        %v598 = vmul.f32 %v503, %v503
        %v599 = vmul.f32 %v505, %v505
        %v600 = vmul.f32 %v574, %v574
        %v601 = vmul.f32 %v576, %v576
        %v602 = vadd.f32 %v594, %v595
        %v603 = vadd.f32 %v602, %v596
        %v604 = vadd.f32 %v603, %v597
        %v605 = vadd.f32 %v604, %v598
        %v606 = vadd.f32 %v605, %v599
        %v607 = vadd.f32 %v606, %v600
        %v608 = vadd.f32 %v607, %v601
        %609 = vadd.xlane.f32.xlu0 %v608
        %v610 = vpop.xlane.xlu0 %609
        %v611 = vrot.slane %v610, 4
        %v612 = vadd.f32 %v610, %v611
        %v613 = vrot.slane %v612, 2
        %v614 = vadd.f32 %v612, %v613
        %v615 = vrot.slane %v614, 1
        %v616 = vadd.f32 %v614, %v615
        %s617 = vtos %v616
        %v618 = vrcp.pop 4096.0
        %s619 = vtos %v618
        %s620 = smul.f32 %s593, %s619
        %v621 = vrcp.pop 4096.0
        %s622 = vtos %v621
        %s623 = smul.f32 %s617, %s622
        %s624 = smul.f32 %s620, %s620
        %s625 = ssub.f32 %s623, %s624
        %s626 = smax.f32 %s625, 0.0
        %s627 = sadd.f32 %s626, 1e-05
        %v628 = vstv %s627
        %v629 = vrsqrt.pop %v628
        %s630 = vtos %v629
        %v631 = vstv %s620
        %v632 = vsub.f32 %v361, %v631
        %v633 = vsub.f32 %v363, %v631
        %v634 = vsub.f32 %v432, %v631
        %v635 = vsub.f32 %v434, %v631
        %v636 = vsub.f32 %v503, %v631
        %v637 = vsub.f32 %v505, %v631
        %v638 = vsub.f32 %v574, %v631
        %v639 = vsub.f32 %v576, %v631
        %v640 = vstv %s630
        %v641 = vmul.f32 %v632, %v640
        %v642 = vmul.f32 %v633, %v640
        %v643 = vmul.f32 %v634, %v640
        %v644 = vmul.f32 %v635, %v640
        %v645 = vmul.f32 %v636, %v640
        %v646 = vmul.f32 %v637, %v640
        %v647 = vmul.f32 %v638, %v640
        %v648 = vmul.f32 %v639, %v640
        %v649 = vld [vmem:[%s3] sm:$0xff]
        %651 = vset.pattern.permute.xlu0 0
        %652 = vperm.xlu0 %651, %v649
        %v653 = vpop.permute.xlu0 %652
        %v655 = vmul.f32 %v641, %v653
        %v656 = vmul.f32 %v642, %v653
        %v657 = vmul.f32 %v643, %v653
        %v658 = vmul.f32 %v644, %v653
        %v659 = vmul.f32 %v645, %v653
        %v660 = vmul.f32 %v646, %v653
        %v661 = vmul.f32 %v647, %v653
        %v662 = vmul.f32 %v648, %v653
        %v663 = vld [vmem:[%s4] sm:$0xff]
        %665 = vset.pattern.permute.xlu0 0
        %666 = vperm.xlu0 %665, %v663
        %v667 = vpop.permute.xlu0 %666
        %v669 = vadd.f32 %v655, %v667
        %v670 = vadd.f32 %v656, %v667
        %v671 = vadd.f32 %v657, %v667
        %v672 = vadd.f32 %v658, %v667
        %v673 = vadd.f32 %v659, %v667
        %v674 = vadd.f32 %v660, %v667
        %v675 = vadd.f32 %v661, %v667
        %v676 = vadd.f32 %v662, %v667
        %v677 = vmax.f32 %v669, 0.0
        %v678 = vmax.f32 %v670, 0.0
        %v679 = vmax.f32 %v671, 0.0
        %v680 = vmax.f32 %v672, 0.0
        %v681 = vmax.f32 %v673, 0.0
        %v682 = vmax.f32 %v674, 0.0
        %v683 = vmax.f32 %v675, 0.0
        %v684 = vmax.f32 %v676, 0.0
        %685 = vst [vmem:[%s242] sm:$0xff] %v677
        %686 = vst [vmem:[%s242 + $0x8] sm:$0xff] %v678
        %687 = vst [vmem:[%s242 + $0x10] sm:$0xff] %v679
        %688 = vst [vmem:[%s242 + $0x18] sm:$0xff] %v680
        %689 = vst [vmem:[%s242 + $0x20] sm:$0xff] %v681
        %690 = vst [vmem:[%s242 + $0x28] sm:$0xff] %v682
        %691 = vst [vmem:[%s242 + $0x30] sm:$0xff] %v683
        %692 = vst [vmem:[%s242 + $0x38] sm:$0xff] %v684
        %s693 = sand.u32 %s140, 1
        %s694 = scalar_lea.sflag [#allocation4], %s693
        %s695 = sand.u32 %s140, 1
        %s696 = smul.addr %s695, 64
        %s697 = scalar_lea.vmem [#allocation5], %s696
        // Predicated region
        $region45: #{tpu_custom_call.1} parent=39 // pred_check
          %p698 = pneg %p150
        $region46: #{tpu_custom_call.1} parent=39 // pred_check_branch
          %700 = sbr.rel (%p698) target = $region48
        $region47: #{tpu_custom_call.1} parent=39 // pred_region
          %s702 = ssub.s32 1024, 1024
          %703 = vsyncadd %s694, %s702
          %s704 = smul.addr %s22, 8
          %s705 = smul.addr %s704, 128
          %s706 = scalar_lea.hbm %s5, %s705
          %s708 = sshll.u32 %s697, 4
          %s709 = int_to_ptr.vmem [resolvable:$true] %s708
          %711 = dma.vmem_to_hbm [thread:$0]  %s709, 1024, %s706, %s694
        $region48: #{tpu_custom_call.1} parent=39 // pred_fallthru
          _
      $region40: #{tpu_custom_call.1} parent=5 // pred_fallthru
        _
      %p712 = scmp.le.s32.totalorder 2, %s17
      // Predicated region
      $region49: #{tpu_custom_call.1} parent=5 // pred_check
        %p713 = pneg %p712
      $region50: #{tpu_custom_call.1} parent=5 // pred_check_branch
        %715 = sbr.rel (%p713) target = $region52
      $region51: #{tpu_custom_call.1} parent=5 // pred_region
        %s716 = ssub.s32 %s17, 2
        // Predicated region
        $region53: #{tpu_custom_call.1} parent=51 // pred_check
          %p717 = pneg %p156
        $region54: #{tpu_custom_call.1} parent=51 // pred_check_branch
          %719 = sbr.rel (%p717) target = $region56
        $region55: #{tpu_custom_call.1} parent=51 // pred_region
          %s720 = sand.u32 %s141, 1
          %s721 = scalar_lea.sflag [#allocation4], %s720
          %s722 = sand.u32 %s141, 1
          %s723 = smul.addr %s722, 64
          %s724 = scalar_lea.vmem [#allocation5], %s723
          %725 = dma.done %s721, 1024
        $region56: #{tpu_custom_call.1} parent=51 // pred_fallthru
          _
      $region52: #{tpu_custom_call.1} parent=5 // pred_fallthru
        _
    $region6: #{tpu_custom_call.1} parent=1 // loop_footer
      %s21 = sadd.s32 1, %s17
    $region7: #{tpu_custom_call.1} parent=1 // loop_footer_branch
      %16 = sbr.rel target = $region3
    $region8: #{tpu_custom_call.1} parent=1 // loop_exit
      _
    %726 = vsyncpa [#allocation3], 1
    %s727 = scalar_lea.sflag [#allocation3], 1
    %728 = vsyncpa %s727, 1
    %729 = vsyncpa [#allocation4], 1
    %s730 = scalar_lea.sflag [#allocation4], 1
    %731 = vsyncpa %s730, 1

</llo_original>
